<compile_context>
chip_gen: v5e
topology: v5e:2x2
jax: 0.10.0
libtpu: 0.0.40
codegen_flags: <defaults>
</compile_context>

<pallas_src>
import jax
import jax.numpy as jnp
from jax.experimental import pallas as pl
from jax.experimental.pallas import tpu as pltpu

_LANE = 128
_SUBLANE = 8
_MAX_TILE_ROWS = 1024  # (1024, 128) f32 = 512 KiB per stream per buffer


# ---------------------------------------------------------------------------
# Kernel bodies
# ---------------------------------------------------------------------------

def _loss_expr(pred, target, unc, beta):
    """Elementwise uncertainty-KL smooth-L1 loss (f32 math)."""
    pred = pred.astype(jnp.float32)
    target = target.astype(jnp.float32)
    unc = unc.astype(jnp.float32)
    diff = jnp.abs(pred - target)
    exp_neg_u = jnp.exp(-unc)                      # EUP slot (cheap)
    quad = (0.5 / beta) * exp_neg_u * diff * diff  # beta is a static constant
    lin = exp_neg_u * (diff - 0.5 * beta)
    # Select between the two exp(-u)-scaled terms, add 0.5*u once afterwards.
    return jnp.where(diff < beta, quad, lin) + 0.5 * unc


def _make_sum_kernel(beta, has_weight):
    """Sum-only kernel: no loss-map writeback (mean/sum reductions)."""

    def kernel(*refs):
        if has_weight:
            pred_ref, target_ref, unc_ref, w_ref, sum_ref, acc_ref = refs
        else:
            pred_ref, target_ref, unc_ref, sum_ref, acc_ref = refs

        i = pl.program_id(0)

        @pl.when(i == 0)
        def _():
            acc_ref[...] = jnp.zeros_like(acc_ref)

        loss = _loss_expr(pred_ref[...], target_ref[...], unc_ref[...], beta)
        if has_weight:
            loss = loss * w_ref[...].astype(jnp.float32)

        tm, lanes = loss.shape
        # vreg-shaped partial accumulation: per-step work stays on the VPU;
        # the single cross-lane/sublane reduce happens once in the epilogue.
        acc_ref[...] += jnp.sum(
            loss.reshape(tm // _SUBLANE, _SUBLANE, lanes), axis=0)

        @pl.when(i == pl.num_programs(0) - 1)
        def _():
            sum_ref[...] = jnp.sum(acc_ref[...], keepdims=True)

    return kernel


def _make_map_kernel(beta, has_weight):
    """Elementwise-map kernel (reduction='none')."""

    def kernel(*refs):
        if has_weight:
            pred_ref, target_ref, unc_ref, w_ref, loss_ref = refs
        else:
            pred_ref, target_ref, unc_ref, loss_ref = refs

        loss = _loss_expr(pred_ref[...], target_ref[...], unc_ref[...], beta)
        if has_weight:
            loss = loss * w_ref[...].astype(jnp.float32)
        loss_ref[...] = loss

    return kernel


# ---------------------------------------------------------------------------
# Layout plumbing + pallas_call wrappers
# ---------------------------------------------------------------------------

def _padded_rows(numel):
    rows = pl.cdiv(numel, _LANE)
    rows = ((rows + _SUBLANE - 1) // _SUBLANE) * _SUBLANE
    if rows > _MAX_TILE_ROWS:
        rows = ((rows + _MAX_TILE_ROWS - 1) // _MAX_TILE_ROWS) * _MAX_TILE_ROWS
    return rows


def _pad_and_reshape(x, rows):
    """Flatten to 1-D, zero-pad, reshape to a lane-dense (rows, 128) slab."""
    if not jnp.issubdtype(x.dtype, jnp.floating):
        x = x.astype(jnp.float32)
    flat = x.reshape(-1)
    pad = rows * _LANE - flat.shape[0]
    if pad:
        flat = jnp.pad(flat, (0, pad))
    return flat.reshape(rows, _LANE)


def _tile_and_grid(rows):
    tm = min(rows, _MAX_TILE_ROWS)
    grid = (rows // tm,)
    tile = pl.BlockSpec((tm, _LANE), lambda i: (i, 0))
    return grid, tile


def _run_sum(pred, target, unc, weight, beta):
    rows = pred.shape[0]
    grid, tile = _tile_and_grid(rows)
    has_weight = weight is not None
    inputs = [pred, target, unc] + ([weight] if has_weight else [])
    in_specs = [tile] * len(inputs)

    out = pl.pallas_call(
        _make_sum_kernel(beta, has_weight),
        out_shape=jax.ShapeDtypeStruct((1, 1), jnp.float32),
        grid_spec=pltpu.PrefetchScalarGridSpec(
            num_scalar_prefetch=0,
            grid=grid,
            in_specs=in_specs,
            out_specs=pl.BlockSpec((1, 1), lambda i: (0, 0)),
            scratch_shapes=[pltpu.VMEM((_SUBLANE, _LANE), jnp.float32)],
        ),
        # TODO(synk): on v7x, add a leading 2-way "parallel" grid axis with
        # per-core partial sums to use both TensorCores.
        compiler_params=pltpu.CompilerParams(
            dimension_semantics=("arbitrary",)),
    )(*inputs)
    return out[0, 0]


def _run_map(pred, target, unc, weight, beta):
    rows = pred.shape[0]
    grid, tile = _tile_and_grid(rows)
    has_weight = weight is not None
    inputs = [pred, target, unc] + ([weight] if has_weight else [])
    in_specs = [tile] * len(inputs)

    return pl.pallas_call(
        _make_map_kernel(beta, has_weight),
        out_shape=jax.ShapeDtypeStruct((rows, _LANE), jnp.float32),
        grid_spec=pltpu.PrefetchScalarGridSpec(
            num_scalar_prefetch=0,
            grid=grid,
            in_specs=in_specs,
            out_specs=tile,
            scratch_shapes=[],
        ),
        compiler_params=pltpu.CompilerParams(
            dimension_semantics=("parallel",)),
    )(*inputs)


# ---------------------------------------------------------------------------
# Module
# ---------------------------------------------------------------------------

class UncertainKLLoss:
    """JAX/Pallas port of mmdet UncertainKLLoss (forward only)."""

    def __init__(self, beta=1.0, reduction='mean', loss_weight=1.0):
        assert beta > 0
        self.beta = float(beta)
        self.reduction = reduction
        self.loss_weight = float(loss_weight)

    def __call__(self, pred, uncertainty, target, weight=None,
                 avg_factor=None, reduction_override=None):
        assert reduction_override in (None, 'none', 'mean', 'sum')
        reduction = (reduction_override if reduction_override
                     else self.reduction)
        assert pred.shape == target.shape and pred.size > 0
        if avg_factor is not None and reduction == 'sum':
            raise ValueError('avg_factor can not be used with reduction="sum"')

        orig_shape = pred.shape
        numel = pred.size
        rows = _padded_rows(numel)

        p2 = _pad_and_reshape(pred, rows)
        t2 = _pad_and_reshape(target, rows)
        u2 = _pad_and_reshape(uncertainty, rows)
        w2 = None if weight is None else _pad_and_reshape(weight, rows)

        if reduction == 'none':
            loss_map = _run_map(p2, t2, u2, w2, self.beta)
            out = loss_map.reshape(-1)[:numel].reshape(orig_shape)
        else:
            loss_sum = _run_sum(p2, t2, u2, w2, self.beta)
            if reduction == 'mean':
                denom = (jnp.float32(numel) if avg_factor is None
                         else jnp.float32(avg_factor))
                out = loss_sum / denom
            else:  # 'sum'
                out = loss_sum
        return self.loss_weight * out


# ---------------------------------------------------------------------------
# Reference + self-test
# ---------------------------------------------------------------------------

def _reference(pred, target, uncertainty, weight, beta, reduction,
               avg_factor, loss_weight):
    pred = pred.astype(jnp.float32)
    target = target.astype(jnp.float32)
    uncertainty = uncertainty.astype(jnp.float32)
    diff = jnp.abs(pred - target)
    loss = jnp.where(
        diff < beta,
        0.5 * jnp.exp(-uncertainty) * diff * diff / beta + 0.5 * uncertainty,
        jnp.exp(-uncertainty) * (diff - 0.5 * beta) + 0.5 * uncertainty)
    if weight is not None:
        loss = loss * weight.astype(jnp.float32)
    if reduction == 'none':
        out = loss
    elif reduction == 'sum':
        out = jnp.sum(loss)
    else:
        denom = avg_factor if avg_factor is not None else loss.size
        out = jnp.sum(loss) / denom
    return loss_weight * out


if __name__ == "__main__":
    key = jax.random.PRNGKey(0)
    k1, k2, k3, k4 = jax.random.split(key, 4)

    N, C = 64, 4  # 64 boxes, 4 bbox-delta coordinates
    pred = jax.random.normal(k1, (N, C), dtype=jnp.float32) * 2.0
    target = jax.random.normal(k2, (N, C), dtype=jnp.float32) * 2.0
    uncertainty = jax.random.normal(k3, (N, C), dtype=jnp.float32) * 0.5
    weight = jax.random.uniform(k4, (N, C), dtype=jnp.float32)

    loss_mod = UncertainKLLoss(beta=1.0, reduction='mean', loss_weight=1.0)

    # mean reduction (default path, sum-only kernel)
    out_mean = loss_mod(pred, uncertainty, target, weight=weight)
    jax.block_until_ready(out_mean)
    ref_mean = _reference(pred, target, uncertainty, weight, 1.0, 'mean',
                          None, 1.0)
    assert jnp.allclose(out_mean, ref_mean, rtol=1e-5, atol=1e-5)

    # sum reduction (sum-only kernel)
    out_sum = loss_mod(pred, uncertainty, target, weight=weight,
                       reduction_override='sum')
    jax.block_until_ready(out_sum)
    ref_sum = _reference(pred, target, uncertainty, weight, 1.0, 'sum',
                         None, 1.0)
    assert jnp.allclose(out_sum, ref_sum, rtol=1e-5, atol=1e-4)

    # 'none' reduction (map-only kernel)
    out_none = loss_mod(pred, uncertainty, target, weight=weight,
                        reduction_override='none')
    jax.block_until_ready(out_none)
    ref_none = _reference(pred, target, uncertainty, weight, 1.0, 'none',
                          None, 1.0)
    assert jnp.allclose(out_none, ref_none, rtol=1e-5, atol=1e-5)

    # unweighted path + avg_factor + ragged box count (exercises padding)
    N2 = 77
    p2 = jax.random.normal(k1, (N2, C), dtype=jnp.float32)
    t2 = jax.random.normal(k2, (N2, C), dtype=jnp.float32)
    u2 = jax.random.normal(k3, (N2, C), dtype=jnp.float32) * 0.3
    out_nw = loss_mod(p2, u2, t2, weight=None, avg_factor=50.0)
    jax.block_until_ready(out_nw)
    ref_nw = _reference(p2, t2, u2, None, 1.0, 'mean', 50.0, 1.0)
    assert jnp.allclose(out_nw, ref_nw, rtol=1e-5, atol=1e-5)

    # bf16 inputs: upcast happens inside the kernel, not in the wrapper
    out_bf = loss_mod(pred.astype(jnp.bfloat16),
                      uncertainty.astype(jnp.bfloat16),
                      target.astype(jnp.bfloat16),
                      weight=weight.astype(jnp.bfloat16))
    jax.block_until_ready(out_bf)
    ref_bf = _reference(pred.astype(jnp.bfloat16),
                        target.astype(jnp.bfloat16),
                        uncertainty.astype(jnp.bfloat16),
                        weight.astype(jnp.bfloat16), 1.0, 'mean', None, 1.0)
    assert jnp.allclose(out_bf, ref_bf, rtol=1e-3, atol=1e-3)

    print("KERNEL_OK")
</pallas_src>

<mosaic_0001>
module attributes {stable_mosaic.version = 11 : i64} {
  func.func @kernel(%arg0: i32, %arg1: memref<8x128xf32, #tpu.memory_space<vmem>>, %arg2: memref<8x128xf32, #tpu.memory_space<vmem>>, %arg3: memref<8x128xf32, #tpu.memory_space<vmem>>, %arg4: memref<8x128xf32, #tpu.memory_space<vmem>>, %arg5: memref<1x1xf32, #tpu.memory_space<vmem>>, %arg6: memref<8x128xf32, #tpu.memory_space<vmem>>) attributes {dimension_semantics = [#tpu.dimension_semantics<arbitrary>], iteration_bounds = array<i64: 1>, scalar_prefetch = 0 : i64, scratch_operands = 1 : i64, tpu.core_type = #tpu.core_type<tc>, window_params = [{transform_indices = @transform_0, window_bounds = array<i64: 8, 128>}, {transform_indices = @transform_1, window_bounds = array<i64: 8, 128>}, {transform_indices = @transform_2, window_bounds = array<i64: 8, 128>}, {transform_indices = @transform_3, window_bounds = array<i64: 8, 128>}, {pipeline_mode = #tpu.pipeline_mode<synchronous>, transform_indices = @transform_4, window_bounds = array<i64: 1, 1>}]} {
    %c0_i32 = arith.constant 0 : i32
    %0 = arith.cmpi eq, %arg0, %c0_i32 : i32
    %1 = arith.extui %0 : i1 to i32
    %c0_i32_0 = arith.constant 0 : i32
    %2 = arith.cmpi ne, %1, %c0_i32_0 : i32
    scf.if %2 {
      %cst_19 = arith.constant 0.000000e+00 : f32
      %34 = vector.broadcast %cst_19 : f32 to vector<8x128xf32>
      %c0_20 = arith.constant 0 : index
      %c0_21 = arith.constant 0 : index
      %35 = vector.load %arg6[%c0_20, %c0_21] : memref<8x128xf32, #tpu.memory_space<vmem>>, vector<8x128xf32>
      tpu.vector_store %arg6[%c0_20, %c0_21], %34 {strides = array<i32>} : memref<8x128xf32, #tpu.memory_space<vmem>>, vector<8x128xf32>,
    } else {
    }
    %c0 = arith.constant 0 : index
    %c0_1 = arith.constant 0 : index
    %3 = vector.load %arg1[%c0, %c0_1] : memref<8x128xf32, #tpu.memory_space<vmem>>, vector<8x128xf32>
    %c0_2 = arith.constant 0 : index
    %c0_3 = arith.constant 0 : index
    %4 = vector.load %arg2[%c0_2, %c0_3] : memref<8x128xf32, #tpu.memory_space<vmem>>, vector<8x128xf32>
    %c0_4 = arith.constant 0 : index
    %c0_5 = arith.constant 0 : index
    %5 = vector.load %arg3[%c0_4, %c0_5] : memref<8x128xf32, #tpu.memory_space<vmem>>, vector<8x128xf32>
    %6 = arith.subf %3, %4 : vector<8x128xf32>
    %7 = math.absf %6 : vector<8x128xf32>
    %cst = arith.constant 0.000000e+00 : f32
    %8 = vector.broadcast %cst : f32 to vector<8x128xf32>
    %9 = arith.subf %8, %5 : vector<8x128xf32>
    %10 = math.exp %9 : vector<8x128xf32>
    %cst_6 = arith.constant 5.000000e-01 : f32
    %11 = vector.broadcast %cst_6 : f32 to vector<8x128xf32>
    %12 = arith.mulf %11, %10 : vector<8x128xf32>
    %13 = arith.mulf %12, %7 : vector<8x128xf32>
    %14 = arith.mulf %13, %7 : vector<8x128xf32>
    %cst_7 = arith.constant 5.000000e-01 : f32
    %15 = vector.broadcast %cst_7 : f32 to vector<8x128xf32>
    %16 = arith.subf %7, %15 : vector<8x128xf32>
    %17 = arith.mulf %10, %16 : vector<8x128xf32>
    %cst_8 = arith.constant 1.000000e+00 : f32
    %18 = vector.broadcast %cst_8 : f32 to vector<8x128xf32>
    %19 = arith.cmpf olt, %7, %18 : vector<8x128xf32>
    %20 = arith.select %19, %14, %17 : vector<8x128xi1>, vector<8x128xf32>
    %cst_9 = arith.constant 5.000000e-01 : f32
    %21 = vector.broadcast %cst_9 : f32 to vector<8x128xf32>
    %22 = arith.mulf %21, %5 : vector<8x128xf32>
    %23 = arith.addf %20, %22 : vector<8x128xf32>
    %c0_10 = arith.constant 0 : index
    %c0_11 = arith.constant 0 : index
    %24 = vector.load %arg4[%c0_10, %c0_11] : memref<8x128xf32, #tpu.memory_space<vmem>>, vector<8x128xf32>
    %25 = arith.mulf %23, %24 : vector<8x128xf32>
    %c0_12 = arith.constant 0 : index
    %c0_13 = arith.constant 0 : index
    %26 = vector.load %arg6[%c0_12, %c0_13] : memref<8x128xf32, #tpu.memory_space<vmem>>, vector<8x128xf32>
    %27 = vector.shape_cast %25 : vector<8x128xf32> to vector<1x8x128xf32>
    %cst_14 = arith.constant dense<0.000000e+00> : vector<8x128xf32>
    %28 = vector.multi_reduction <add>, %27, %cst_14 [0] : vector<1x8x128xf32> to vector<8x128xf32>
    %29 = arith.addf %26, %28 : vector<8x128xf32>
    %c0_15 = arith.constant 0 : index
    %c0_16 = arith.constant 0 : index
    %30 = vector.load %arg6[%c0_15, %c0_16] : memref<8x128xf32, #tpu.memory_space<vmem>>, vector<8x128xf32>
    tpu.vector_store %arg6[%c0_15, %c0_16], %29 {strides = array<i32>} : memref<8x128xf32, #tpu.memory_space<vmem>>, vector<8x128xf32>,
    %c0_i32_17 = arith.constant 0 : i32
    %31 = arith.cmpi eq, %arg0, %c0_i32_17 : i32
    %32 = arith.extui %31 : i1 to i32
    %c0_i32_18 = arith.constant 0 : i32
    %33 = arith.cmpi ne, %32, %c0_i32_18 : i32
    scf.if %33 {
      %c0_19 = arith.constant 0 : index
      %c0_20 = arith.constant 0 : index
      %34 = vector.load %arg6[%c0_19, %c0_20] : memref<8x128xf32, #tpu.memory_space<vmem>>, vector<8x128xf32>
      %35 = vector.shape_cast %34 : vector<8x128xf32> to vector<1x8x128xf32>
      %cst_21 = arith.constant dense<0.000000e+00> : vector<1xf32>
      %36 = vector.multi_reduction <add>, %35, %cst_21 [1, 2] : vector<1x8x128xf32> to vector<1xf32>
      %37 = vector.shape_cast %36 : vector<1xf32> to vector<1x1x1xf32>
      %38 = vector.extract %37[0, 0, 0] : f32 from vector<1x1x1xf32>
      %39 = vector.broadcast %38 : f32 to vector<1x1xf32>
      %c0_22 = arith.constant 0 : index
      %c0_23 = arith.constant 0 : index
      %40 = vector.load %arg5[%c0_22, %c0_23] : memref<1x1xf32, #tpu.memory_space<vmem>>, vector<1x1xf32>
      tpu.vector_store %arg5[%c0_22, %c0_23], %39 {strides = array<i32>} : memref<1x1xf32, #tpu.memory_space<vmem>>, vector<1x1xf32>,
    } else {
    }
    return
  }
  func.func @transform_0(%arg0: i32) -> (i32, i32) {
    %c0_i32 = arith.constant 0 : i32
    %c0_i32_0 = arith.constant 0 : i32
    return %arg0, %c0_i32 : i32, i32
  }
  func.func @transform_1(%arg0: i32) -> (i32, i32) {
    %c0_i32 = arith.constant 0 : i32
    %c0_i32_0 = arith.constant 0 : i32
    return %arg0, %c0_i32 : i32, i32
  }
  func.func @transform_2(%arg0: i32) -> (i32, i32) {
    %c0_i32 = arith.constant 0 : i32
    %c0_i32_0 = arith.constant 0 : i32
    return %arg0, %c0_i32 : i32, i32
  }
  func.func @transform_3(%arg0: i32) -> (i32, i32) {
    %c0_i32 = arith.constant 0 : i32
    %c0_i32_0 = arith.constant 0 : i32
    return %arg0, %c0_i32 : i32, i32
  }
  func.func @transform_4(%arg0: i32) -> (i32, i32) {
    %c0_i32 = arith.constant 0 : i32
    %c0_i32_0 = arith.constant 0 : i32
    %c0_i32_1 = arith.constant 0 : i32
    return %c0_i32, %c0_i32_0 : i32, i32
  }
}

</mosaic_0001>

<llo_original>
// kernel: tpu_custom_call.1
$region0: #{tpu_custom_call.1}
  #allocation0 [shape = 'u32[]', space=smem, size = 0x4, offset = 0x4, fixed_abs, tag = 'smem constant byte address 0x4 - core index']
  #allocation1 [shape = 'u32[72,128]{1,0:T(1,128)}', space=vmem, size = 0x9000, scoped, tag = 'internal scratch']
  #allocation2 [shape = 'f32[8,128]{1,0:T(8,128)}', space=vmem, size = 0x1000, scoped, tag = 'scratch operand']
  %s0 = inlined_call_operand.hbm [shape: f32[8,128], index: 0, kind: input, shape index: {}]
  %s1 = inlined_call_operand.hbm [shape: f32[8,128], index: 1, kind: input, shape index: {}]
  %s2 = inlined_call_operand.hbm [shape: f32[8,128], index: 2, kind: input, shape index: {}]
  %s3 = inlined_call_operand.hbm [shape: f32[8,128], index: 3, kind: input, shape index: {}]
  %s4 = inlined_call_operand.hbm [shape: f32[1,1], index: 4, kind: output, shape index: {}]
  %s5 = sld [smem:[#allocation0]]
  $region50: #{tpu_custom_call.1} parent=0
    _
  %s7 = ssub.s32 1, %s5
  %s8 = scalar_select 0, %s7, %s5
  $region1: #{tpu_custom_call.1} parent=0
    #allocation3 [shape = 'u8[4096]{0}', space=vmem, size = 0x1000, scoped, tag = 'input window, operand 0, single buffered']
    #allocation4 [shape = 's32[1]{0}', space=sflag, size = 0x4, scoped, tag = 'scoped memory for tpu_custom_call.1']
    #allocation5 [shape = 's32[1]{0}', space=sflag, size = 0x4, scoped, tag = 'scoped memory for tpu_custom_call.1']
    #allocation6 [shape = 'u8[4096]{0}', space=vmem, size = 0x1000, scoped, tag = 'input window, operand 1, single buffered']
    #allocation7 [shape = 's32[1]{0}', space=sflag, size = 0x4, scoped, tag = 'scoped memory for tpu_custom_call.1']
    #allocation8 [shape = 'u8[4096]{0}', space=vmem, size = 0x1000, scoped, tag = 'input window, operand 2, single buffered']
    #allocation9 [shape = 'u8[4096]{0}', space=vmem, size = 0x1000, scoped, tag = 'input window, operand 3, single buffered']
    #allocation10 [shape = 's32[1]{0}', space=sflag, size = 0x4, scoped, tag = 'scoped memory for tpu_custom_call.1']
    #allocation11 [shape = 'u8[512]{0}', space=vmem, size = 0x400, scoped, tag = 'output window, operand 0, single buffered']
    %9 = vsyncpa [#allocation4], 0
    %10 = vsyncpa [#allocation7], 0
    %11 = vsyncpa [#allocation10], 0
    %12 = vsyncpa [#allocation5], 0
    // Predicated region
    $region2: #{tpu_custom_call.1} parent=1 // pred_check
      _
    $region3: #{tpu_custom_call.1} parent=1 // pred_check_branch
      %14 = sbr.rel (0) target = $region5
    $region4: #{tpu_custom_call.1} parent=1 // pred_region
      %16 = vsyncadd [#allocation4], 0
      %s18 = sshll.u32 %s0, 4
      %s19 = int_to_ptr.hbm [resolvable:$true] %s18
      %s20 = sshll.u32 [#allocation3], 4
      %s21 = int_to_ptr.vmem [resolvable:$true] %s20
      %23 = dma.hbm_to_vmem [thread:$0]  %s19, 128, %s21, [#allocation4]
    $region5: #{tpu_custom_call.1} parent=1 // pred_fallthru
      _
    // Predicated region
    $region6: #{tpu_custom_call.1} parent=1 // pred_check
      _
    $region7: #{tpu_custom_call.1} parent=1 // pred_check_branch
      %25 = sbr.rel (0) target = $region9
    $region8: #{tpu_custom_call.1} parent=1 // pred_region
      %27 = vsyncadd [#allocation7], 0
      %s29 = sshll.u32 %s1, 4
      %s30 = int_to_ptr.hbm [resolvable:$true] %s29
      %s31 = sshll.u32 [#allocation6], 4
      %s32 = int_to_ptr.vmem [resolvable:$true] %s31
      %34 = dma.hbm_to_vmem [thread:$0]  %s30, 128, %s32, [#allocation7]
    $region9: #{tpu_custom_call.1} parent=1 // pred_fallthru
      _
    // Predicated region
    $region10: #{tpu_custom_call.1} parent=1 // pred_check
      _
    $region11: #{tpu_custom_call.1} parent=1 // pred_check_branch
      %36 = sbr.rel (0) target = $region13
    $region12: #{tpu_custom_call.1} parent=1 // pred_region
      %38 = vsyncadd [#allocation7], 0
      %s40 = sshll.u32 %s2, 4
      %s41 = int_to_ptr.hbm [resolvable:$true] %s40
      %s42 = sshll.u32 [#allocation8], 4
      %s43 = int_to_ptr.vmem [resolvable:$true] %s42
      %45 = dma.hbm_to_vmem [thread:$0]  %s41, 128, %s43, [#allocation7]
    $region13: #{tpu_custom_call.1} parent=1 // pred_fallthru
      _
    // Predicated region
    $region14: #{tpu_custom_call.1} parent=1 // pred_check
      _
    $region15: #{tpu_custom_call.1} parent=1 // pred_check_branch
      %47 = sbr.rel (0) target = $region17
    $region16: #{tpu_custom_call.1} parent=1 // pred_region
      %49 = vsyncadd [#allocation10], 0
      %s51 = sshll.u32 %s3, 4
      %s52 = int_to_ptr.hbm [resolvable:$true] %s51
      %s53 = sshll.u32 [#allocation9], 4
      %s54 = int_to_ptr.vmem [resolvable:$true] %s53
      %56 = dma.hbm_to_vmem [thread:$0]  %s52, 128, %s54, [#allocation10]
    $region17: #{tpu_custom_call.1} parent=1 // pred_fallthru
      _
    // Predicated region
    $region18: #{tpu_custom_call.1} parent=1 // pred_check
      _
    $region19: #{tpu_custom_call.1} parent=1 // pred_check_branch
      %58 = sbr.rel (0) target = $region21
    $region20: #{tpu_custom_call.1} parent=1 // pred_region
      %60 = dma.done [#allocation4], 128
    $region21: #{tpu_custom_call.1} parent=1 // pred_fallthru
      _
    // Predicated region
    $region22: #{tpu_custom_call.1} parent=1 // pred_check
      _
    $region23: #{tpu_custom_call.1} parent=1 // pred_check_branch
      %62 = sbr.rel (0) target = $region25
    $region24: #{tpu_custom_call.1} parent=1 // pred_region
      %64 = dma.done [#allocation7], 128
    $region25: #{tpu_custom_call.1} parent=1 // pred_fallthru
      _
    // Predicated region
    $region26: #{tpu_custom_call.1} parent=1 // pred_check
      _
    $region27: #{tpu_custom_call.1} parent=1 // pred_check_branch
      %66 = sbr.rel (0) target = $region29
    $region28: #{tpu_custom_call.1} parent=1 // pred_region
      %68 = dma.done [#allocation7], 128
    $region29: #{tpu_custom_call.1} parent=1 // pred_fallthru
      _
    // Predicated region
    $region30: #{tpu_custom_call.1} parent=1 // pred_check
      _
    $region31: #{tpu_custom_call.1} parent=1 // pred_check_branch
      %70 = sbr.rel (0) target = $region33
    $region32: #{tpu_custom_call.1} parent=1 // pred_region
      %72 = dma.done [#allocation10], 128
    $region33: #{tpu_custom_call.1} parent=1 // pred_fallthru
      _
    %p73 = scmp.eq.s32.totalorder 0, 0
    // Predicated region
    $region34: #{tpu_custom_call.1} parent=1 // pred_check
      %p74 = pneg %p73
    $region35: #{tpu_custom_call.1} parent=1 // pred_check_branch
      %76 = sbr.rel (%p74) target = $region37
    $region36: #{tpu_custom_call.1} parent=1 // pred_region
      %77 = vst [vmem:[#allocation2] sm:$0xff] 0.0
    $region37: #{tpu_custom_call.1} parent=1 // pred_fallthru
      _
    %v78 = vld [vmem:[#allocation3] sm:$0xff]
    %v79 = vld [vmem:[#allocation6] sm:$0xff]
    %v80 = vld [vmem:[#allocation8] sm:$0xff]
    %v81 = vsub.f32 %v78, %v79
    %v82 = vand.u32 2147483647, %v81
    %v83 = vsub.f32 0.0, %v80
    %v84 = vmul.f32 %v83, 1.442695
    %v85 = vpow.pop %v84
    %v86 = vmul.f32 %v85, 0.5
    %v87 = vmul.f32 %v86, %v82
    %v88 = vmul.f32 %v87, %v82
    %v89 = vsub.f32 %v82, 0.5
    %v90 = vmul.f32 %v85, %v89
    %vm91 = vcmp.lt.f32.partialorder %v82, 1.0
    %v92 = vsel %vm91, %v88, %v90
    %v93 = vmul.f32 %v80, 0.5
    %v94 = vadd.f32 %v92, %v93
    %v95 = vld [vmem:[#allocation9] sm:$0xff]
    %v96 = vmul.f32 %v94, %v95
    %v97 = vld [vmem:[#allocation2] sm:$0xff]
    %v98 = vadd.f32 %v96, 0.0
    %v99 = vadd.f32 %v97, %v98
    %100 = vst [vmem:[#allocation2] sm:$0xff] %v99
    // Predicated region
    $region38: #{tpu_custom_call.1} parent=1 // pred_check
      %p101 = pneg %p73
    $region39: #{tpu_custom_call.1} parent=1 // pred_check_branch
      %103 = sbr.rel (%p101) target = $region41
    $region40: #{tpu_custom_call.1} parent=1 // pred_region
      %v104 = vld [vmem:[#allocation2] sm:$0xff]
      %105 = vadd.xlane.f32.xlu0 %v104
      %v106 = vpop.xlane.xlu0 %105
      %v107 = vrot.slane %v106, 4
      %v108 = vadd.f32 %v106, %v107
      %v109 = vrot.slane %v108, 2
      %v110 = vadd.f32 %v108, %v109
      %v111 = vrot.slane %v110, 1
      %v112 = vadd.f32 %v110, %v111
      %s113 = vtos %v112
      %v114 = vstv %s113
      %vm115 = vcmask 0
      %116 = vst.msk [vmem:[#allocation11] sm:$0x1] %vm115, %v114
    $region41: #{tpu_custom_call.1} parent=1 // pred_fallthru
      _
    // Predicated region
    $region42: #{tpu_custom_call.1} parent=1 // pred_check
      _
    $region43: #{tpu_custom_call.1} parent=1 // pred_check_branch
      %118 = sbr.rel (0) target = $region45
    $region44: #{tpu_custom_call.1} parent=1 // pred_region
      %120 = vsyncadd [#allocation5], 0
      %s122 = sshll.u32 [#allocation11], 4
      %s123 = int_to_ptr.vmem [resolvable:$true] %s122
      %s124 = sshll.u32 %s4, 4
      %s125 = int_to_ptr.hbm [resolvable:$true] %s124
      %127 = dma.vmem_to_hbm [thread:$0]  %s123, 16, %s125, [#allocation5]
    $region45: #{tpu_custom_call.1} parent=1 // pred_fallthru
      _
    // Predicated region
    $region46: #{tpu_custom_call.1} parent=1 // pred_check
      _
    $region47: #{tpu_custom_call.1} parent=1 // pred_check_branch
      %129 = sbr.rel (0) target = $region49
    $region48: #{tpu_custom_call.1} parent=1 // pred_region
      %131 = dma.done [#allocation5], 16
    $region49: #{tpu_custom_call.1} parent=1 // pred_fallthru
      _
    %132 = vsyncpa [#allocation4], 1
    %133 = vsyncpa [#allocation7], 1
    %134 = vsyncpa [#allocation10], 1
    %135 = vsyncpa [#allocation5], 1

</llo_original>
